<compile_context>
chip_gen: v7x
topology: tpu7x:2x2x1
jax: 0.10.0
libtpu: 0.0.40
codegen_flags: <defaults>
</compile_context>

<pallas_src>
import jax
import jax.numpy as jnp
from jax.experimental import pallas as pl
from jax.experimental.pallas import tpu as pltpu

# Small shapes consistent with the encoder this module lives in.
B = 2    # batch
S = 8    # sequence length
D = 32   # feature dim (reduction axis, dim=2 of the (B, S, D) input)


def l2norm_kernel(x_ref, o_ref):
    """x_ref: (TR, D) rows in VMEM; o_ref: (1, TR) lane-dense norms for those rows."""
    x = x_ref[...]
    if x.dtype != jnp.float32:
        # Only pay the cast when the surrounding model feeds bf16 activations;
        # f32 inputs (the v5e-friendly default) skip it entirely.
        x = x.astype(jnp.float32)
    # Square on the VPU, reduce across lanes on the XLU (keep this OFF the MXU:
    # a D=32 matmul would waste the systolic array and add MRF/MRB latency).
    sq_sum = jnp.sum(x * x, axis=-1)                    # (TR,)
    norms = jnp.sqrt(sq_sum)                            # EUP
    # Lane-dense store: one (1, TR) slab instead of a (TR, 1) masked store.
    o_ref[...] = jnp.reshape(norms, (1, norms.shape[0])).astype(o_ref.dtype)


def _row_tile(d, itemsize, target_bytes=2 << 20, cap=8192):
    """Row tile: ~target_bytes of input per block, multiple of 128 lanes, capped
    so 2x double-buffered tiles fit comfortably even in v7x's smaller VMEM."""
    tr = target_bytes // max(1, d * itemsize)
    tr = (tr // 128) * 128
    return int(max(128, min(cap, tr)))


def l2norm_forward(x, row_tile=None):
    """x: (B, S, D)  ->  (B, S, 1) L2 norm over dim=2, keepdim (matches torch.norm)."""
    b, s, d = x.shape
    rows = b * s
    out_dtype = x.dtype
    x2d = x.reshape(rows, d)                            # wrapper-side layout plumbing

    tr = row_tile if row_tile is not None else _row_tile(d, x.dtype.itemsize)

    if rows <= tr:
        # Whole problem in one block (block == full array dims, no padding).
        tr = rows
        padded = rows
    else:
        padded = pl.cdiv(rows, tr) * tr
    grid_rows = padded // tr

    if padded != rows:
        # Zero rows have norm 0 and are sliced off below.
        x2d = jnp.pad(x2d, ((0, padded - rows), (0, 0)))

    out = pl.pallas_call(
        l2norm_kernel,
        out_shape=jax.ShapeDtypeStruct((grid_rows, tr), out_dtype),
        grid=(grid_rows,),
        in_specs=[pl.BlockSpec((tr, d), lambda i: (i, 0))],
        out_specs=pl.BlockSpec((1, tr), lambda i: (i, 0)),   # lane-dense output slab
        compiler_params=pltpu.CompilerParams(
            # Row blocks are independent: shard across v7x's 2 TensorCores.
            dimension_semantics=("parallel",)),
    )(x2d)

    return out.reshape(padded)[:rows].reshape(b, s, 1)  # restore keepdim shape


def reference_forward(x):
    """Pure-JAX reference identical to torch.norm(x, p=2, dim=2, keepdim=True)."""
    return jnp.sqrt(jnp.sum(x * x, axis=2, keepdims=True))


if __name__ == "__main__":
    key = jax.random.PRNGKey(0)
    x = jax.random.normal(key, (B, S, D), jnp.float32)

    out = jax.block_until_ready(l2norm_forward(x))
    ref = reference_forward(x)
    assert out.shape == (B, S, 1), out.shape
    assert jnp.allclose(out, ref, atol=1e-5, rtol=1e-5), "Pallas output mismatch vs JAX reference"

    # Also exercise the gridded / padded / lane-dense-output path (forced small tile).
    x2 = jax.random.normal(jax.random.PRNGKey(1), (2, 1000, D), jnp.float32)
    out2 = jax.block_until_ready(l2norm_forward(x2, row_tile=128))
    ref2 = reference_forward(x2)
    assert out2.shape == (2, 1000, 1), out2.shape
    assert jnp.allclose(out2, ref2, atol=1e-5, rtol=1e-5), "Gridded path mismatch vs JAX reference"

    print("KERNEL_OK")
</pallas_src>

<mosaic_0001>
module attributes {stable_mosaic.version = 11 : i64} {
  func.func @l2norm_kernel(%arg0: i32, %arg1: memref<16x32xf32, #tpu.memory_space<vmem>>, %arg2: memref<1x16xf32, #tpu.memory_space<vmem>>) attributes {dimension_semantics = [#tpu.dimension_semantics<parallel>], iteration_bounds = array<i64: 1>, scalar_prefetch = 0 : i64, scratch_operands = 0 : i64, tpu.core_type = #tpu.core_type<tc>, window_params = [{transform_indices = @transform_0, window_bounds = array<i64: 16, 32>}, {transform_indices = @transform_1, window_bounds = array<i64: 1, 16>}]} {
    %c0 = arith.constant 0 : index
    %c0_0 = arith.constant 0 : index
    %0 = vector.load %arg1[%c0, %c0_0] : memref<16x32xf32, #tpu.memory_space<vmem>>, vector<16x32xf32>
    %1 = arith.mulf %0, %0 : vector<16x32xf32>
    %cst = arith.constant dense<0.000000e+00> : vector<16xf32>
    %2 = vector.multi_reduction <add>, %1, %cst [1] : vector<16x32xf32> to vector<16xf32>
    %3 = math.sqrt %2 : vector<16xf32>
    %4 = vector.shape_cast %3 : vector<16xf32> to vector<1x16xf32>
    %c0_1 = arith.constant 0 : index
    %c0_2 = arith.constant 0 : index
    %5 = vector.load %arg2[%c0_1, %c0_2] : memref<1x16xf32, #tpu.memory_space<vmem>>, vector<1x16xf32>
    tpu.vector_store %arg2[%c0_1, %c0_2], %4 {strides = array<i32>} : memref<1x16xf32, #tpu.memory_space<vmem>>, vector<1x16xf32>,
    return
  }
  func.func @transform_0(%arg0: i32) -> (i32, i32) {
    %c0_i32 = arith.constant 0 : i32
    %c0_i32_0 = arith.constant 0 : i32
    return %arg0, %c0_i32 : i32, i32
  }
  func.func @transform_1(%arg0: i32) -> (i32, i32) {
    %c0_i32 = arith.constant 0 : i32
    %c0_i32_0 = arith.constant 0 : i32
    return %arg0, %c0_i32 : i32, i32
  }
}

</mosaic_0001>

<llo_original>
// kernel: tpu_custom_call.1
$region0: #{tpu_custom_call.1}
  #allocation0 [shape = 'u32[]', space=smem, size = 0x4, offset = 0x4, fixed_abs, tag = 'smem constant byte address 0x4 - core index']
  #allocation1 [shape = 'u32[144,128]{1,0:T(1,128)}', space=vmem, size = 0x12000, scoped, tag = 'internal scratch']
  %s0 = inlined_call_operand.hbm [shape: f32[16,32], index: 0, kind: input, shape index: {}]
  %s1 = inlined_call_operand.hbm [shape: f32[1,16], index: 1, kind: output, shape index: {}]
  %s2 = sld [smem:[#allocation0]]
  $region18: #{tpu_custom_call.1} parent=0
    _
  %s4 = ssub.s32 1, %s2
  %s5 = scalar_select 0, %s4, %s2
  $region1: #{tpu_custom_call.1} parent=0
    #allocation2 [shape = 'u8[8192]{0}', space=vmem, size = 0x2000, scoped, tag = 'input window, operand 0, single buffered']
    #allocation3 [shape = 's32[1]{0}', space=sflag, size = 0x4, scoped, tag = 'scoped memory for tpu_custom_call.1']
    #allocation4 [shape = 's32[1]{0}', space=sflag, size = 0x4, scoped, tag = 'scoped memory for tpu_custom_call.1']
    #allocation5 [shape = 'u8[512]{0}', space=vmem, size = 0x400, scoped, tag = 'output window, operand 0, single buffered']
    %6 = vsyncpa [#allocation3], 0
    %7 = vsyncpa [#allocation4], 0
    // Predicated region
    $region2: #{tpu_custom_call.1} parent=1 // pred_check
      _
    $region3: #{tpu_custom_call.1} parent=1 // pred_check_branch
      %9 = sbr.rel (0) target = $region5
    $region4: #{tpu_custom_call.1} parent=1 // pred_region
      %s11 = ssub.s32 256, 256
      %12 = vsyncadd [#allocation3], %s11
      %s13 = sshll.u32 [#allocation2], 4
      %s14 = int_to_ptr.vmem [resolvable:$true] %s13
      %19 = dma.hbm_to_vmem [thread:$0]  %s0, 256, %s14, [#allocation3], 128, 128, 8
    $region5: #{tpu_custom_call.1} parent=1 // pred_fallthru
      _
    // Predicated region
    $region6: #{tpu_custom_call.1} parent=1 // pred_check
      _
    $region7: #{tpu_custom_call.1} parent=1 // pred_check_branch
      %21 = sbr.rel (0) target = $region9
    $region8: #{tpu_custom_call.1} parent=1 // pred_region
      %22 = dma.done [#allocation3], 256
    $region9: #{tpu_custom_call.1} parent=1 // pred_fallthru
      _
    %v23 = vld [vmem:[#allocation2] sm:$0xff]
    %v24 = vld [vmem:[#allocation2 + $0x8] sm:$0xff]
    %v25 = vmul.f32 %v23, %v23
    %v26 = vmul.f32 %v24, %v24
    %vm27 = vcmask 261120
    %v28 = vsel %vm27, %v25, 0.0
    %29 = vadd.xlane.f32.xlu0 %v28
    %v30 = vpop.xlane.xlu0 %29
    %v31 = vsel %vm27, %v26, 0.0
    %32 = vadd.xlane.f32.xlu0 %v31
    %v33 = vpop.xlane.xlu0 %32
    %v34 = vrsqrt.pop %v30
    %v35 = vmul.f32 %v30, %v34
    %vm36 = vcmp.eq.f32.partialorder %v30, inf
    %v37 = vsel %vm36, %v30, %v35
    %vm38 = vcmp.eq.f32.partialorder %v30, 0.0
    %v39 = vand.u32 %v30, 2147483648
    %v40 = vsel %vm38, %v39, %v37
    %v41 = vrsqrt.pop %v33
    %v42 = vmul.f32 %v33, %v41
    %vm43 = vcmp.eq.f32.partialorder %v33, inf
    %v44 = vsel %vm43, %v33, %v42
    %vm45 = vcmp.eq.f32.partialorder %v33, 0.0
    %v46 = vand.u32 %v33, 2147483648
    %v47 = vsel %vm45, %v46, %v44
    %v50 = vlaneseq
    %v51 = vand.u32 %v50, 127
    %v52 = vlaneseq
    %v53 = vshrl.u32 %v52, 7
    %v54 = vsub.s32 %v51, %v53
    %v55 = vrot.slane %v40, %v54
    %v56 = vadd.s32 %v51, 4294967288
    %v57 = vlaneseq
    %v58 = vshrl.u32 %v57, 7
    %v59 = vsub.s32 %v56, %v58
    %v60 = vrot.slane %v47, %v59
    %vm61 = vcmask 130112
    %v62 = vsel %vm61, %v60, %v55
    %vm64 = vcmask 122880
    %65 = vst.msk [vmem:[#allocation5] sm:$0x1] %vm64, %v62
    // Predicated region
    $region10: #{tpu_custom_call.1} parent=1 // pred_check
      _
    $region11: #{tpu_custom_call.1} parent=1 // pred_check_branch
      %67 = sbr.rel (0) target = $region13
    $region12: #{tpu_custom_call.1} parent=1 // pred_region
      %s69 = ssub.s32 16, 16
      %70 = vsyncadd [#allocation4], %s69
      %s72 = sshll.u32 [#allocation5], 4
      %s73 = int_to_ptr.vmem [resolvable:$true] %s72
      %75 = dma.vmem_to_hbm [thread:$0]  %s73, 16, %s1, [#allocation4]
    $region13: #{tpu_custom_call.1} parent=1 // pred_fallthru
      _
    // Predicated region
    $region14: #{tpu_custom_call.1} parent=1 // pred_check
      _
    $region15: #{tpu_custom_call.1} parent=1 // pred_check_branch
      %77 = sbr.rel (0) target = $region17
    $region16: #{tpu_custom_call.1} parent=1 // pred_region
      %78 = dma.done [#allocation4], 16
    $region17: #{tpu_custom_call.1} parent=1 // pred_fallthru
      _
    %79 = vsyncpa [#allocation3], 1
    %80 = vsyncpa [#allocation4], 1

</llo_original>
